<compile_context>
chip_gen: v7x
topology: tpu7x:2x2x1
jax: 0.10.0
libtpu: 0.0.40
codegen_flags: <defaults>
</compile_context>

<pallas_src>
import jax
import jax.numpy as jnp
from jax.experimental import pallas as pl
from jax.experimental.pallas import tpu as pltpu


def _zero_gate_kernel(nmt_ref, bert_ref, wa_ref, wb_ref, out_ref):
    # delta = (bert @ Wa) @ (Wb * alpha/k)   -- scaling already folded into Wb.
    # Native-dtype MXU inputs, f32 accumulation.
    h = jnp.dot(bert_ref[...], wa_ref[...], preferred_element_type=jnp.float32)
    delta = jnp.dot(h.astype(wb_ref.dtype), wb_ref[...],
                    preferred_element_type=jnp.float32)
    # Load nmt only here (short live range -> no full-tile f32 copy held across matmuls).
    out_ref[...] = (nmt_ref[...].astype(jnp.float32) + delta).astype(out_ref.dtype)


def _round_up(x, m):
    return (x + m - 1) // m * m


def _vmem_capacity_bytes():
    try:
        cap = getattr(pltpu.get_tpu_info(), "vmem_capacity_bytes", None)
        if cap:
            return int(cap)
    except Exception:
        pass
    return 64 << 20  # conservative fallback (v7x per-TensorCore)


def zero_gate(nmt_out, bert_out, wa, wb, *, alpha=1, k=4, tile_n=2048):
    """ZeroGate forward: nmt_out + B(A(bert_out)) * (alpha / k).

    wa: [dim, k]  (A.weight transposed), wb: [k, dim]  (B.weight transposed).
    nmt_out / bert_out: [..., dim].  PyTorch mutates nmt_out in place; here the
    result is returned functionally (output aliases the nmt buffer).
    """
    orig_shape = nmt_out.shape
    dim = orig_shape[-1]
    nmt2d = nmt_out.reshape(-1, dim)
    bert2d = bert_out.reshape(-1, dim)
    n = nmt2d.shape[0]

    # Keep weights in the activation dtype (bf16 stays bf16 for the MXU); fold alpha/k
    # into the up-projection weight once on the host.
    compute_dtype = bert2d.dtype
    scaling = float(alpha) / float(k)
    wa = wa.astype(compute_dtype)
    wb_scaled = (wb.astype(jnp.float32) * scaling).astype(compute_dtype)

    # Per-chip VMEM budget: largest [tn, dim] tiles such that the 6 live
    # double-buffered stream tiles (2 inputs + 1 output) plus the lane-padded
    # weights fit comfortably in scoped VMEM.
    vmem_cap = _vmem_capacity_bytes()
    vmem_limit = min(int(vmem_cap * 0.75), 96 << 20)   # v7x ~48 MiB, v5e/v6e 96 MiB
    act_item = max(jnp.dtype(nmt2d.dtype).itemsize, jnp.dtype(bert2d.dtype).itemsize)
    w_item = jnp.dtype(compute_dtype).itemsize
    # Wa block [dim, k] lane-pads k->128; Wb block [k, dim] sublane-pads k->8; x2 buffers.
    w_bytes = 2 * (dim * 128 + 8 * dim) * w_item
    tile_budget = max(0, int(vmem_limit * 0.75) - w_bytes)
    stream_bytes_per_row = 6 * dim * act_item           # 2 in + 1 out, double-buffered
    max_rows = max(8, tile_budget // stream_bytes_per_row)

    tn = min(tile_n, max_rows)
    tn = max(8, (tn // 8) * 8)
    tn = min(tn, _round_up(n, 8))                       # never larger than the problem
    if n > 8:                                           # >=2 grid steps so both v7x TCs work
        tn = min(tn, _round_up(-(-n // 2), 8))
    tn = max(8, tn)

    grid = (pl.cdiv(n, tn),)                            # ragged last block; OOB rows masked
    row_spec = pl.BlockSpec((tn, dim), lambda i: (i, 0))

    out2d = pl.pallas_call(
        _zero_gate_kernel,
        out_shape=jax.ShapeDtypeStruct((n, dim), nmt_out.dtype),
        grid=grid,
        in_specs=[
            row_spec,                                    # nmt tile  (streamed, aliased w/ out)
            row_spec,                                    # bert tile (streamed)
            pl.BlockSpec((dim, k), lambda i: (0, 0)),    # Wa            (VMEM-resident)
            pl.BlockSpec((k, dim), lambda i: (0, 0)),    # Wb * alpha/k  (VMEM-resident)
        ],
        out_specs=row_spec,
        input_output_aliases={0: 0},                     # in-place like PyTorch nmt_out +=
        compiler_params=pltpu.CompilerParams(
            dimension_semantics=("parallel",),
            vmem_limit_bytes=vmem_limit,
        ),
    )(nmt2d, bert2d, wa, wb_scaled)

    return out2d.reshape(orig_shape)


if __name__ == "__main__":
    batch, seq, dim, k, alpha = 2, 8, 512, 4, 1

    key = jax.random.PRNGKey(0)
    ka, kb, kn, kber = jax.random.split(key, 4)
    # A.weight ~ normal (as in reset_parameters); B.weight nonzero here so the
    # low-rank path is actually exercised by the numeric check.
    wa = jax.random.normal(ka, (dim, k), jnp.float32)                 # A.weight.T
    wb = jax.random.uniform(kb, (k, dim), jnp.float32, -0.5, 0.5)     # B.weight.T

    nmt_out = jax.random.normal(kn, (batch, seq, dim), jnp.float32)
    bert_out = jax.random.normal(kber, (batch, seq, dim), jnp.float32)

    # Pure-JAX reference mirroring the PyTorch forward.
    def ref_fn(nmt, bert):
        return nmt + ((bert @ wa) @ wb) * (alpha / k)

    # 1) Even split (n % tn == 0).
    out = zero_gate(nmt_out, bert_out, wa, wb, alpha=alpha, k=k)
    out = jax.block_until_ready(out)
    assert out.shape == nmt_out.shape
    assert jnp.allclose(out, ref_fn(nmt_out, bert_out), atol=1e-4, rtol=1e-4), \
        "mismatch vs reference (even split)"

    # 2) Ragged last block (n not a multiple of the tile) — exercises masked stores.
    nmt_r = nmt_out[:, :5, :]
    bert_r = bert_out[:, :5, :]
    out_r = zero_gate(nmt_r, bert_r, wa, wb, alpha=alpha, k=k)
    out_r = jax.block_until_ready(out_r)
    assert out_r.shape == nmt_r.shape
    assert jnp.allclose(out_r, ref_fn(nmt_r, bert_r), atol=1e-4, rtol=1e-4), \
        "mismatch vs reference (ragged split)"

    # TODO(synk): get_loss() is a no-op in the PyTorch module; nothing to translate.
    print("KERNEL_OK")
</pallas_src>

<mosaic_0001>
module attributes {stable_mosaic.version = 11 : i64} {
  func.func @_zero_gate_kernel(%arg0: i32, %arg1: memref<8x512xf32, #tpu.memory_space<vmem>>, %arg2: memref<8x512xf32, #tpu.memory_space<vmem>>, %arg3: memref<512x4xf32, #tpu.memory_space<vmem>>, %arg4: memref<4x512xf32, #tpu.memory_space<vmem>>, %arg5: memref<8x512xf32, #tpu.memory_space<vmem>>) attributes {dimension_semantics = [#tpu.dimension_semantics<parallel>], iteration_bounds = array<i64: 2>, scalar_prefetch = 0 : i64, scratch_operands = 0 : i64, tpu.core_type = #tpu.core_type<tc>, window_params = [{transform_indices = @transform_0, window_bounds = array<i64: 8, 512>}, {transform_indices = @transform_1, window_bounds = array<i64: 8, 512>}, {pipeline_mode = #tpu.pipeline_mode<synchronous>, transform_indices = @transform_2, window_bounds = array<i64: 512, 4>}, {pipeline_mode = #tpu.pipeline_mode<synchronous>, transform_indices = @transform_3, window_bounds = array<i64: 4, 512>}, {transform_indices = @transform_4, window_bounds = array<i64: 8, 512>}]} {
    %c0 = arith.constant 0 : index
    %c0_0 = arith.constant 0 : index
    %0 = vector.load %arg2[%c0, %c0_0] : memref<8x512xf32, #tpu.memory_space<vmem>>, vector<8x512xf32>
    %c0_1 = arith.constant 0 : index
    %c0_2 = arith.constant 0 : index
    %1 = vector.load %arg3[%c0_1, %c0_2] : memref<512x4xf32, #tpu.memory_space<vmem>>, vector<512x4xf32>
    %cst = arith.constant dense<0.000000e+00> : vector<8x4xf32>
    %2 = tpu.matmul %0, %1, %cst {dimension_numbers = #tpu.dot_dimension_numbers<[1], [0], [0], [1], [0, 0, 1, 1], [], []>} : vector<8x512xf32>, vector<512x4xf32>, vector<8x4xf32> -> vector<8x4xf32>
    %c0_3 = arith.constant 0 : index
    %c0_4 = arith.constant 0 : index
    %3 = vector.load %arg4[%c0_3, %c0_4] : memref<4x512xf32, #tpu.memory_space<vmem>>, vector<4x512xf32>
    %cst_5 = arith.constant dense<0.000000e+00> : vector<8x512xf32>
    %4 = tpu.matmul %2, %3, %cst_5 {dimension_numbers = #tpu.dot_dimension_numbers<[1], [0], [0], [1], [0, 0, 1, 1], [], []>} : vector<8x4xf32>, vector<4x512xf32>, vector<8x512xf32> -> vector<8x512xf32>
    %c0_6 = arith.constant 0 : index
    %c0_7 = arith.constant 0 : index
    %5 = vector.load %arg1[%c0_6, %c0_7] : memref<8x512xf32, #tpu.memory_space<vmem>>, vector<8x512xf32>
    %6 = arith.addf %5, %4 : vector<8x512xf32>
    %c0_8 = arith.constant 0 : index
    %c0_9 = arith.constant 0 : index
    %7 = vector.load %arg5[%c0_8, %c0_9] : memref<8x512xf32, #tpu.memory_space<vmem>>, vector<8x512xf32>
    tpu.vector_store %arg5[%c0_8, %c0_9], %6 {strides = array<i32>} : memref<8x512xf32, #tpu.memory_space<vmem>>, vector<8x512xf32>,
    return
  }
  func.func @transform_0(%arg0: i32) -> (i32, i32) {
    %c0_i32 = arith.constant 0 : i32
    %c0_i32_0 = arith.constant 0 : i32
    return %arg0, %c0_i32 : i32, i32
  }
  func.func @transform_1(%arg0: i32) -> (i32, i32) {
    %c0_i32 = arith.constant 0 : i32
    %c0_i32_0 = arith.constant 0 : i32
    return %arg0, %c0_i32 : i32, i32
  }
  func.func @transform_2(%arg0: i32) -> (i32, i32) {
    %c0_i32 = arith.constant 0 : i32
    %c0_i32_0 = arith.constant 0 : i32
    %c0_i32_1 = arith.constant 0 : i32
    return %c0_i32, %c0_i32_0 : i32, i32
  }
  func.func @transform_3(%arg0: i32) -> (i32, i32) {
    %c0_i32 = arith.constant 0 : i32
    %c0_i32_0 = arith.constant 0 : i32
    %c0_i32_1 = arith.constant 0 : i32
    return %c0_i32, %c0_i32_0 : i32, i32
  }
  func.func @transform_4(%arg0: i32) -> (i32, i32) {
    %c0_i32 = arith.constant 0 : i32
    %c0_i32_0 = arith.constant 0 : i32
    return %arg0, %c0_i32 : i32, i32
  }
}

</mosaic_0001>

<llo_original>
// kernel: tpu_custom_call.1
$region0: #{tpu_custom_call.1}
  #allocation0 [shape = 'u32[]', space=smem, size = 0x4, offset = 0x4, fixed_abs, tag = 'smem constant byte address 0x4 - core index']
  #allocation1 [shape = 'u32[144,128]{1,0:T(1,128)}', space=vmem, size = 0x12000, scoped, tag = 'internal scratch']
  %s0 = inlined_call_operand.hbm [shape: f32[16,512], index: 0, kind: input, shape index: {}, may-alias: {0,4}]
  %s1 = inlined_call_operand.vmem [shape: f32[16,512], index: 1, kind: input, shape index: {}]
  %s2 = inlined_call_operand.vmem [shape: f32[512,4], index: 2, kind: input, shape index: {}]
  %s3 = inlined_call_operand.vmem [shape: f32[4,512], index: 3, kind: input, shape index: {}]
  %s4 = inlined_call_operand.hbm [shape: f32[16,512], index: 4, kind: output, shape index: {}, may-alias: {0,4}]
  %s5 = sld [smem:[#allocation0]]
  $region53: #{tpu_custom_call.1} parent=0
    _
  %s7 = ssub.s32 1, %s5
  %s8 = scalar_select 0, %s7, %s5
  $region1: #{tpu_custom_call.1} parent=0
    #allocation2 [shape = 'u8[32768]{0}', space=vmem, size = 0x8000, scoped, tag = 'input window, operand 0']
    #allocation3 [shape = 's32[2]{0}', space=sflag, size = 0x8, scoped, tag = 'scoped memory for tpu_custom_call.1']
    #allocation4 [shape = 's32[2]{0}', space=sflag, size = 0x8, scoped, tag = 'scoped memory for tpu_custom_call.1']
    #allocation5 [shape = 'u8[32768]{0}', space=vmem, size = 0x8000, scoped, tag = 'output window, operand 0']
    %9 = vsyncpa [#allocation3], 0
    %s10 = scalar_lea.sflag [#allocation3], 1
    %11 = vsyncpa %s10, 0
    %12 = vsyncpa [#allocation4], 0
    %s13 = scalar_lea.sflag [#allocation4], 1
    %14 = vsyncpa %s13, 0
    loop: start=0, step=1, limit=4
    $region2: #{tpu_custom_call.1} parent=1 // loop_pre_header
      _
    $region3: #{tpu_custom_call.1} parent=1 // loop_header
      %s16 = sphi 0, %s20
      %p17 = scmp.ge.s32.totalorder %s16, 4
      %s26 = sphi 0, %s28
      %s29 = sphi 0, %s26
      %s30 = sphi 0, %s29
      %s46 = sphi 0, %s30
      %s52 = sphi 0, %s54
      %s55 = sphi 0, %s52
      %s56 = sphi 0, %s55
      %s72 = sphi 0, %s56
      %s76 = sphi 0, %s76
      %s78 = sphi 0, %s76
      %s79 = sphi 0, %s78
      %s93 = sphi 0, %s79
      %s97 = sphi 0, %s97
      %s99 = sphi 0, %s97
      %s100 = sphi 0, %s99
      %s114 = sphi 0, %s100
      %s120 = sphi 0, %s122
      %s123 = sphi 0, %s120
      %s124 = sphi 0, %s123
      %s140 = sphi 0, %s124
    $region4: #{tpu_custom_call.1} parent=1 // loop_header_branch
      %19 = sbr.rel (%p17) target = $region8
    $region5: #{tpu_custom_call.1} parent=1 // loop_body
      %s21 = ssub.s32 %s16, 1
      %s22 = ssub.s32 %s16, 2
      %s23 = sadd.s32 %s16, 1
      %s24 = ssub.s32 %s16, %s23
      %p25 = scmp.eq.s32.totalorder %s24, 0
      %s27 = sadd.s32 %s26, 1
      %s28 = scalar_select %p25, %s26, %s27
      %p31 = pneg %p25
      %p32 = scmp.eq.s32.totalorder %s16, 1
      %p33 = por %p31, %p32
      %p34 = scmp.ne.s32.totalorder %s26, %s29
      %p35 = scmp.eq.s32.totalorder %s16, 0
      %p36 = por %p34, %p35
      %p37 = scmp.ne.s32.totalorder %s26, %s29
      %p38 = scmp.eq.s32.totalorder %s21, 1
      %p39 = por %p37, %p38
      %p40 = scmp.ne.s32.totalorder %s29, %s30
      %p41 = scmp.eq.s32.totalorder %s21, 0
      %p42 = por %p40, %p41
      %p43 = scmp.ne.s32.totalorder %s29, %s30
      %p44 = scmp.eq.s32.totalorder %s22, 1
      %p45 = por %p43, %p44
      %p47 = scmp.ne.s32.totalorder %s30, %s46
      %p48 = scmp.eq.s32.totalorder %s22, 0
      %p49 = por %p47, %p48
      %s50 = ssub.s32 %s16, %s23
      %p51 = scmp.eq.s32.totalorder %s50, 0
      %s53 = sadd.s32 %s52, 1
      %s54 = scalar_select %p51, %s52, %s53
      %p57 = pneg %p51
      %p58 = scmp.eq.s32.totalorder %s16, 1
      %p59 = por %p57, %p58
      %p60 = scmp.ne.s32.totalorder %s52, %s55
      %p61 = scmp.eq.s32.totalorder %s16, 0
      %p62 = por %p60, %p61
      %p63 = scmp.ne.s32.totalorder %s52, %s55
      %p64 = scmp.eq.s32.totalorder %s21, 1
      %p65 = por %p63, %p64
      %p66 = scmp.ne.s32.totalorder %s55, %s56
      %p67 = scmp.eq.s32.totalorder %s21, 0
      %p68 = por %p66, %p67
      %p69 = scmp.ne.s32.totalorder %s55, %s56
      %p70 = scmp.eq.s32.totalorder %s22, 1
      %p71 = por %p69, %p70
      %p73 = scmp.ne.s32.totalorder %s56, %s72
      %p74 = scmp.eq.s32.totalorder %s22, 0
      %p75 = por %p73, %p74
      %s77 = sadd.s32 %s76, 1
      %p80 = scmp.eq.s32.totalorder %s16, 1
      %p81 = scmp.ne.s32.totalorder %s76, %s78
      %p82 = scmp.eq.s32.totalorder %s16, 0
      %p83 = por %p81, %p82
      %p84 = scmp.ne.s32.totalorder %s76, %s78
      %p85 = scmp.eq.s32.totalorder %s21, 1
      %p86 = por %p84, %p85
      %p87 = scmp.ne.s32.totalorder %s78, %s79
      %p88 = scmp.eq.s32.totalorder %s21, 0
      %p89 = por %p87, %p88
      %p90 = scmp.ne.s32.totalorder %s78, %s79
      %p91 = scmp.eq.s32.totalorder %s22, 1
      %p92 = por %p90, %p91
      %p94 = scmp.ne.s32.totalorder %s79, %s93
      %p95 = scmp.eq.s32.totalorder %s22, 0
      %p96 = por %p94, %p95
      %s98 = sadd.s32 %s97, 1
      %p101 = scmp.eq.s32.totalorder %s16, 1
      %p102 = scmp.ne.s32.totalorder %s97, %s99
      %p103 = scmp.eq.s32.totalorder %s16, 0
      %p104 = por %p102, %p103
      %p105 = scmp.ne.s32.totalorder %s97, %s99
      %p106 = scmp.eq.s32.totalorder %s21, 1
      %p107 = por %p105, %p106
      %p108 = scmp.ne.s32.totalorder %s99, %s100
      %p109 = scmp.eq.s32.totalorder %s21, 0
      %p110 = por %p108, %p109
      %p111 = scmp.ne.s32.totalorder %s99, %s100
      %p112 = scmp.eq.s32.totalorder %s22, 1
      %p113 = por %p111, %p112
      %p115 = scmp.ne.s32.totalorder %s100, %s114
      %p116 = scmp.eq.s32.totalorder %s22, 0
      %p117 = por %p115, %p116
      %s118 = ssub.s32 %s16, %s23
      %p119 = scmp.eq.s32.totalorder %s118, 0
      %s121 = sadd.s32 %s120, 1
      %s122 = scalar_select %p119, %s120, %s121
      %p125 = pneg %p119
      %p126 = scmp.eq.s32.totalorder %s16, 1
      %p127 = por %p125, %p126
      %p128 = scmp.ne.s32.totalorder %s120, %s123
      %p129 = scmp.eq.s32.totalorder %s16, 0
      %p130 = por %p128, %p129
      %p131 = scmp.ne.s32.totalorder %s120, %s123
      %p132 = scmp.eq.s32.totalorder %s21, 1
      %p133 = por %p131, %p132
      %p134 = scmp.ne.s32.totalorder %s123, %s124
      %p135 = scmp.eq.s32.totalorder %s21, 0
      %p136 = por %p134, %p135
      %p137 = scmp.ne.s32.totalorder %s123, %s124
      %p138 = scmp.eq.s32.totalorder %s22, 1
      %p139 = por %p137, %p138
      %p141 = scmp.ne.s32.totalorder %s124, %s140
      %p142 = scmp.eq.s32.totalorder %s22, 0
      %p143 = por %p141, %p142
      %p144 = scmp.le.s32.totalorder 1, %s16
      %p145 = scmp.lt.s32.totalorder %s16, 3
      %p146 = pnand %p144, %p145
      %p147 = pneg %p146
      // Predicated region
      $region9: #{tpu_custom_call.1} parent=5 // pred_check
        _
      $region10: #{tpu_custom_call.1} parent=5 // pred_check_branch
        %149 = sbr.rel (%p146) target = $region12
      $region11: #{tpu_custom_call.1} parent=5 // pred_region
        %s150 = ssub.s32 %s16, 1
        // Predicated region
        $region13: #{tpu_custom_call.1} parent=11 // pred_check
          %p151 = pneg %p89
        $region14: #{tpu_custom_call.1} parent=11 // pred_check_branch
          %153 = sbr.rel (%p151) target = $region16
        $region15: #{tpu_custom_call.1} parent=11 // pred_region
          _
        $region16: #{tpu_custom_call.1} parent=11 // pred_fallthru
          _
        // Predicated region
        $region17: #{tpu_custom_call.1} parent=11 // pred_check
          %p154 = pneg %p110
        $region18: #{tpu_custom_call.1} parent=11 // pred_check_branch
          %156 = sbr.rel (%p154) target = $region20
        $region19: #{tpu_custom_call.1} parent=11 // pred_region
          _
        $region20: #{tpu_custom_call.1} parent=11 // pred_fallthru
          _
      $region12: #{tpu_custom_call.1} parent=5 // pred_fallthru
        _
      %p157 = scmp.lt.s32.totalorder %s16, 2
      // Predicated region
      $region21: #{tpu_custom_call.1} parent=5 // pred_check
        %p158 = pneg %p157
      $region22: #{tpu_custom_call.1} parent=5 // pred_check_branch
        %160 = sbr.rel (%p158) target = $region24
      $region23: #{tpu_custom_call.1} parent=5 // pred_region
        // Predicated region
        $region25: #{tpu_custom_call.1} parent=23 // pred_check
          %p161 = pneg %p36
        $region26: #{tpu_custom_call.1} parent=23 // pred_check_branch
          %163 = sbr.rel (%p161) target = $region28
        $region27: #{tpu_custom_call.1} parent=23 // pred_region
          %s164 = sand.u32 %s26, 1
          %s165 = scalar_lea.sflag [#allocation3], %s164
          %s166 = sand.u32 %s26, 1
          %s167 = smul.addr %s166, 32
          %s168 = scalar_lea.vmem [#allocation2], %s167
          %s170 = ssub.s32 512, 512
          %171 = vsyncadd %s165, %s170
          %s172 = smul.addr %s16, 4
          %s173 = smul.addr %s172, 128
          %s174 = scalar_lea.hbm %s0, %s173
          %s176 = sshll.u32 %s168, 4
          %s177 = int_to_ptr.vmem [resolvable:$true] %s176
          %179 = dma.hbm_to_vmem [thread:$0]  %s174, 512, %s177, %s165
        $region28: #{tpu_custom_call.1} parent=23 // pred_fallthru
          _
        // Predicated region
        $region29: #{tpu_custom_call.1} parent=23 // pred_check
          %p180 = pneg %p62
        $region30: #{tpu_custom_call.1} parent=23 // pred_check_branch
          %182 = sbr.rel (%p180) target = $region32
        $region31: #{tpu_custom_call.1} parent=23 // pred_region
          %p183 = scmp.lt.s32.totalorder %s16, 1
          %s184 = scalar_select %p183, %s16, 1
          %s185 = smul.addr %s184, 4
          %s186 = smul.addr %s185, 8
          %s187 = scalar_lea.vmem %s1, %s186
        $region32: #{tpu_custom_call.1} parent=23 // pred_fallthru
          _
      $region24: #{tpu_custom_call.1} parent=5 // pred_fallthru
        _
      %p188 = scmp.le.s32.totalorder 1, %s16
      %p189 = scmp.lt.s32.totalorder %s16, 3
      %p190 = pnand %p188, %p189
      %p191 = pneg %p190
      // Predicated region
      $region33: #{tpu_custom_call.1} parent=5 // pred_check
        _
      $region34: #{tpu_custom_call.1} parent=5 // pred_check_branch
        %193 = sbr.rel (%p190) target = $region36
      $region35: #{tpu_custom_call.1} parent=5 // pred_region
        %s194 = ssub.s32 %s16, 1
        %s195 = sand.u32 %s29, 1
        %s196 = scalar_lea.sflag [#allocation3], %s195
        %s197 = sand.u32 %s29, 1
        %s198 = smul.addr %s197, 32
        %s199 = scalar_lea.vmem [#allocation2], %s198
        // Predicated region
        $region37: #{tpu_custom_call.1} parent=35 // pred_check
          %p200 = pneg %p42
        $region38: #{tpu_custom_call.1} parent=35 // pred_check_branch
          %202 = sbr.rel (%p200) target = $region40
        $region39: #{tpu_custom_call.1} parent=35 // pred_region
          %203 = dma.done %s196, 512
        $region40: #{tpu_custom_call.1} parent=35 // pred_fallthru
          _
        %s204 = sand.u32 %s29, 1
        %s205 = scalar_lea.sflag [#allocation3], %s204
        %s206 = sand.u32 %s29, 1
        %s207 = smul.addr %s206, 32
        %s208 = scalar_lea.vmem [#allocation2], %s207
        %p209 = pneg %p42
        %p210 = pneg %p39
        %p211 = scmp.lt.s32.totalorder %s21, 1
        %s212 = scalar_select %p211, %s21, 1
        %s213 = smul.addr %s212, 4
        %s214 = smul.addr %s213, 8
        %s215 = scalar_lea.vmem %s1, %s214
        %p216 = pneg %p68
        %p217 = pneg %p65
        %p218 = pneg %p89
        %p219 = pneg %p86
        %p220 = pneg %p110
        %p221 = pneg %p107
        %p222 = pneg %p136
        %p223 = pneg %p133
        %s224 = sand.u32 %s123, 1
        %s225 = scalar_lea.sflag [#allocation4], %s224
        %s226 = sand.u32 %s123, 1
        %s227 = smul.addr %s226, 32
        %s228 = scalar_lea.vmem [#allocation5], %s227
        %p229 = scmp.lt.s32.totalorder %s21, 1
        %s230 = scalar_select %p229, %s21, 1
        %s231 = smul.addr %s230, 4
        %s232 = smul.addr %s231, 8
        %s233 = scalar_lea.vmem %s1, %s232
        %v234 = vld [vmem:[%s233] sm:$0xff]
        %v235 = vld [vmem:[%s233 + $0x8] sm:$0xff]
        %v236 = vld [vmem:[%s233 + $0x10] sm:$0xff]
        %v237 = vld [vmem:[%s233 + $0x18] sm:$0xff]
        %v238 = vld [vmem:[%s2] sm:$0xff]
        %v239 = vld [vmem:[%s2 + $0x8] sm:$0xff]
        %v240 = vld [vmem:[%s2 + $0x10] sm:$0xff]
        %v241 = vld [vmem:[%s2 + $0x18] sm:$0xff]
        %v242 = vld [vmem:[%s2 + $0x20] sm:$0xff]
        %v243 = vld [vmem:[%s2 + $0x28] sm:$0xff]
        %v244 = vld [vmem:[%s2 + $0x30] sm:$0xff]
        %v245 = vld [vmem:[%s2 + $0x38] sm:$0xff]
        %v246 = vld [vmem:[%s2 + $0x40] sm:$0xff]
        %v247 = vld [vmem:[%s2 + $0x48] sm:$0xff]
        %v248 = vld [vmem:[%s2 + $0x50] sm:$0xff]
        %v249 = vld [vmem:[%s2 + $0x58] sm:$0xff]
        %v250 = vld [vmem:[%s2 + $0x60] sm:$0xff]
        %v251 = vld [vmem:[%s2 + $0x68] sm:$0xff]
        %v252 = vld [vmem:[%s2 + $0x70] sm:$0xff]
        %v253 = vld [vmem:[%s2 + $0x78] sm:$0xff]
        %v254 = vld [vmem:[%s2 + $0x80] sm:$0xff]
        %v255 = vld [vmem:[%s2 + $0x88] sm:$0xff]
        %v256 = vld [vmem:[%s2 + $0x90] sm:$0xff]
        %v257 = vld [vmem:[%s2 + $0x98] sm:$0xff]
        %v258 = vld [vmem:[%s2 + $0xa0] sm:$0xff]
        %v259 = vld [vmem:[%s2 + $0xa8] sm:$0xff]
        %v260 = vld [vmem:[%s2 + $0xb0] sm:$0xff]
        %v261 = vld [vmem:[%s2 + $0xb8] sm:$0xff]
        %v262 = vld [vmem:[%s2 + $0xc0] sm:$0xff]
        %v263 = vld [vmem:[%s2 + $0xc8] sm:$0xff]
        %v264 = vld [vmem:[%s2 + $0xd0] sm:$0xff]
        %v265 = vld [vmem:[%s2 + $0xd8] sm:$0xff]
        %v266 = vld [vmem:[%s2 + $0xe0] sm:$0xff]
        %v267 = vld [vmem:[%s2 + $0xe8] sm:$0xff]
        %v268 = vld [vmem:[%s2 + $0xf0] sm:$0xff]
        %v269 = vld [vmem:[%s2 + $0xf8] sm:$0xff]
        %v270 = vld [vmem:[%s2 + $0x100] sm:$0xff]
        %v271 = vld [vmem:[%s2 + $0x108] sm:$0xff]
        %v272 = vld [vmem:[%s2 + $0x110] sm:$0xff]
        %v273 = vld [vmem:[%s2 + $0x118] sm:$0xff]
        %v274 = vld [vmem:[%s2 + $0x120] sm:$0xff]
        %v275 = vld [vmem:[%s2 + $0x128] sm:$0xff]
        %v276 = vld [vmem:[%s2 + $0x130] sm:$0xff]
        %v277 = vld [vmem:[%s2 + $0x138] sm:$0xff]
        %v278 = vld [vmem:[%s2 + $0x140] sm:$0xff]
        %v279 = vld [vmem:[%s2 + $0x148] sm:$0xff]
        %v280 = vld [vmem:[%s2 + $0x150] sm:$0xff]
        %v281 = vld [vmem:[%s2 + $0x158] sm:$0xff]
        %v282 = vld [vmem:[%s2 + $0x160] sm:$0xff]
        %v283 = vld [vmem:[%s2 + $0x168] sm:$0xff]
        %v284 = vld [vmem:[%s2 + $0x170] sm:$0xff]
        %v285 = vld [vmem:[%s2 + $0x178] sm:$0xff]
        %v286 = vld [vmem:[%s2 + $0x180] sm:$0xff]
        %v287 = vld [vmem:[%s2 + $0x188] sm:$0xff]
        %v288 = vld [vmem:[%s2 + $0x190] sm:$0xff]
        %v289 = vld [vmem:[%s2 + $0x198] sm:$0xff]
        %v290 = vld [vmem:[%s2 + $0x1a0] sm:$0xff]
        %v291 = vld [vmem:[%s2 + $0x1a8] sm:$0xff]
        %v292 = vld [vmem:[%s2 + $0x1b0] sm:$0xff]
        %v293 = vld [vmem:[%s2 + $0x1b8] sm:$0xff]
        %v294 = vld [vmem:[%s2 + $0x1c0] sm:$0xff]
        %v295 = vld [vmem:[%s2 + $0x1c8] sm:$0xff]
        %v296 = vld [vmem:[%s2 + $0x1d0] sm:$0xff]
        %v297 = vld [vmem:[%s2 + $0x1d8] sm:$0xff]
        %v298 = vld [vmem:[%s2 + $0x1e0] sm:$0xff]
        %v299 = vld [vmem:[%s2 + $0x1e8] sm:$0xff]
        %v300 = vld [vmem:[%s2 + $0x1f0] sm:$0xff]
        %v301 = vld [vmem:[%s2 + $0x1f8] sm:$0xff]
        %302 = vmatprep.subr.mxu0 0.0
        %303 = vmatpush1.msra.mxu0 %v238
        %304 = vmatprep.subr.mxu0 0.0
        %305 = vmatpush1.msra.mxu0 %v239
        %306 = vmatprep.subr.mxu0 0.0
        %307 = vmatpush1.msra.mxu0 %v240
        %308 = vmatprep.subr.mxu0 0.0
        %309 = vmatpush1.msra.mxu0 %v241
        %310 = vmatprep.subr.mxu0 0.0
        %311 = vmatpush1.msra.mxu0 %v242
        %312 = vmatprep.subr.mxu0 0.0
        %313 = vmatpush1.msra.mxu0 %v243
        %314 = vmatprep.subr.mxu0 0.0
        %315 = vmatpush1.msra.mxu0 %v244
        %316 = vmatprep.subr.mxu0 0.0
        %317 = vmatpush1.msra.mxu0 %v245
        %318 = vmatprep.subr.mxu0 0.0
        %319 = vmatpush1.msra.mxu0 %v246
        %320 = vmatprep.subr.mxu0 0.0
        %321 = vmatpush1.msra.mxu0 %v247
        %322 = vmatprep.subr.mxu0 0.0
        %323 = vmatpush1.msra.mxu0 %v248
        %324 = vmatprep.subr.mxu0 0.0
        %325 = vmatpush1.msra.mxu0 %v249
        %326 = vmatprep.subr.mxu0 0.0
        %327 = vmatpush1.msra.mxu0 %v250
        %328 = vmatprep.subr.mxu0 0.0
        %329 = vmatpush1.msra.mxu0 %v251
        %330 = vmatprep.subr.mxu0 0.0
        %331 = vmatpush1.msra.mxu0 %v252
        %332 = vmatprep.subr.mxu0 0.0
        %333 = vmatpush1.msra.mxu0 %v253
        %334 = vmatprep.subr.mxu0 0.0
        %335 = vmatpush1.msra.mxu0 %v254
        %336 = vmatprep.subr.mxu0 0.0
        %337 = vmatpush1.msra.mxu0 %v255
        %338 = vmatprep.subr.mxu0 0.0
        %339 = vmatpush1.msra.mxu0 %v256
        %340 = vmatprep.subr.mxu0 0.0
        %341 = vmatpush1.msra.mxu0 %v257
        %342 = vmatprep.subr.mxu0 0.0
        %343 = vmatpush1.msra.mxu0 %v258
        %344 = vmatprep.subr.mxu0 0.0
        %345 = vmatpush1.msra.mxu0 %v259
        %346 = vmatprep.subr.mxu0 0.0
        %347 = vmatpush1.msra.mxu0 %v260
        %348 = vmatprep.subr.mxu0 0.0
        %349 = vmatpush1.msra.mxu0 %v261
        %350 = vmatprep.subr.mxu0 0.0
        %351 = vmatpush1.msra.mxu0 %v262
        %352 = vmatprep.subr.mxu0 0.0
        %353 = vmatpush1.msra.mxu0 %v263
        %354 = vmatprep.subr.mxu0 0.0
        %355 = vmatpush1.msra.mxu0 %v264
        %356 = vmatprep.subr.mxu0 0.0
        %357 = vmatpush1.msra.mxu0 %v265
        %358 = vmatprep.subr.mxu0 0.0
        %359 = vmatpush1.msra.mxu0 %v266
        %360 = vmatprep.subr.mxu0 0.0
        %361 = vmatpush1.msra.mxu0 %v267
        %362 = vmatprep.subr.mxu0 0.0
        %363 = vmatpush1.msra.mxu0 %v268
        %364 = vmatprep.subr.mxu0 0.0
        %365 = vmatpush1.msra.mxu0 %v269
        %366 = vmatprep.mubr.f32.mxu0 %v235
        %367 = vmatmul.mubr.f32.gmra.mrb[0].mxu0 %v234
        %v368 = vpop.f32.mrb[0].mxu0
        %v369 = vadd.f32 0.0, %v368
        %v370 = vpop.f32.mrb[0].mxu0
        %371 = vdwg.mxu0
        %372 = vmatprep.subr.mxu0 0.0
        %373 = vmatpush1.msra.mxu0 %v270
        %374 = vmatprep.subr.mxu0 0.0
        %375 = vmatpush1.msra.mxu0 %v271
        %376 = vmatprep.subr.mxu0 0.0
        %377 = vmatpush1.msra.mxu0 %v272
        %378 = vmatprep.subr.mxu0 0.0
        %379 = vmatpush1.msra.mxu0 %v273
        %380 = vmatprep.subr.mxu0 0.0
        %381 = vmatpush1.msra.mxu0 %v274
        %382 = vmatprep.subr.mxu0 0.0
        %383 = vmatpush1.msra.mxu0 %v275
        %384 = vmatprep.subr.mxu0 0.0
        %385 = vmatpush1.msra.mxu0 %v276
        %386 = vmatprep.subr.mxu0 0.0
        %387 = vmatpush1.msra.mxu0 %v277
        %388 = vmatprep.subr.mxu0 0.0
        %389 = vmatpush1.msra.mxu0 %v278
        %390 = vmatprep.subr.mxu0 0.0
        %391 = vmatpush1.msra.mxu0 %v279
        %392 = vmatprep.subr.mxu0 0.0
        %393 = vmatpush1.msra.mxu0 %v280
        %394 = vmatprep.subr.mxu0 0.0
        %395 = vmatpush1.msra.mxu0 %v281
        %396 = vmatprep.subr.mxu0 0.0
        %397 = vmatpush1.msra.mxu0 %v282
        %398 = vmatprep.subr.mxu0 0.0
        %399 = vmatpush1.msra.mxu0 %v283
        %400 = vmatprep.subr.mxu0 0.0
        %401 = vmatpush1.msra.mxu0 %v284
        %402 = vmatprep.subr.mxu0 0.0
        %403 = vmatpush1.msra.mxu0 %v285
        %404 = vmatprep.subr.mxu0 0.0
        %405 = vmatpush1.msra.mxu0 %v286
        %406 = vmatprep.subr.mxu0 0.0
        %407 = vmatpush1.msra.mxu0 %v287
        %408 = vmatprep.subr.mxu0 0.0
        %409 = vmatpush1.msra.mxu0 %v288
        %410 = vmatprep.subr.mxu0 0.0
        %411 = vmatpush1.msra.mxu0 %v289
        %412 = vmatprep.subr.mxu0 0.0
        %413 = vmatpush1.msra.mxu0 %v290
        %414 = vmatprep.subr.mxu0 0.0
        %415 = vmatpush1.msra.mxu0 %v291
        %416 = vmatprep.subr.mxu0 0.0
        %417 = vmatpush1.msra.mxu0 %v292
        %418 = vmatprep.subr.mxu0 0.0
        %419 = vmatpush1.msra.mxu0 %v293
        %420 = vmatprep.subr.mxu0 0.0
        %421 = vmatpush1.msra.mxu0 %v294
        %422 = vmatprep.subr.mxu0 0.0
        %423 = vmatpush1.msra.mxu0 %v295
        %424 = vmatprep.subr.mxu0 0.0
        %425 = vmatpush1.msra.mxu0 %v296
        %426 = vmatprep.subr.mxu0 0.0
        %427 = vmatpush1.msra.mxu0 %v297
        %428 = vmatprep.subr.mxu0 0.0
        %429 = vmatpush1.msra.mxu0 %v298
        %430 = vmatprep.subr.mxu0 0.0
        %431 = vmatpush1.msra.mxu0 %v299
        %432 = vmatprep.subr.mxu0 0.0
        %433 = vmatpush1.msra.mxu0 %v300
        %434 = vmatprep.subr.mxu0 0.0
        %435 = vmatpush1.msra.mxu0 %v301
        %436 = vmatprep.mubr.f32.mxu0 %v237
        %437 = vmatmul.mubr.f32.gmra.mrb[0].mxu0 %v236
        %v438 = vpop.f32.mrb[0].mxu0
        %v439 = vadd.f32 %v369, %v438
        %v440 = vpop.f32.mrb[0].mxu0
        %441 = vdwg.mxu0
        %v442 = vld [vmem:[%s3] sm:$0xff]
        %v443 = vld [vmem:[%s3 + $0x8] sm:$0xff]
        %v446 = vcombine.high %v442, %v442
        %v447 = vcombine.high %v443, %v443
        %vm448 = vcmask 31744
        %v450 = vsel %vm448, %v439, 0
        %vm452 = vcmask 1043456
        %v453 = vsel %vm452, %v442, 0
        %v455 = vsel %vm452, %v446, 0
        %v457 = vsel %vm452, %v443, 0
        %v459 = vsel %vm452, %v447, 0
        %461 = vmatprep.subr.mxu0 %v455
        %462 = vmatpush1.msra.mxu0 %v453
        %463 = vmatprep.subr.mxu0 0.0
        %464 = vmatpush1.msra.mxu0 0.0
        %465 = vmatprep.subr.mxu0 0.0
        %466 = vmatpush1.msra.mxu0 0.0
        %467 = vmatprep.subr.mxu0 0.0
        %468 = vmatpush1.msra.mxu0 0.0
        %469 = vmatprep.subr.mxu0 0.0
        %470 = vmatpush1.msra.mxu0 0.0
        %471 = vmatprep.subr.mxu0 0.0
        %472 = vmatpush1.msra.mxu0 0.0
        %473 = vmatprep.subr.mxu0 0.0
        %474 = vmatpush1.msra.mxu0 0.0
        %475 = vmatprep.subr.mxu0 0.0
        %476 = vmatpush1.msra.mxu0 0.0
        %477 = vmatprep.subr.mxu0 0.0
        %478 = vmatpush1.msra.mxu0 0.0
        %479 = vmatprep.subr.mxu0 0.0
        %480 = vmatpush1.msra.mxu0 0.0
        %481 = vmatprep.subr.mxu0 0.0
        %482 = vmatpush1.msra.mxu0 0.0
        %483 = vmatprep.subr.mxu0 0.0
        %484 = vmatpush1.msra.mxu0 0.0
        %485 = vmatprep.subr.mxu0 0.0
        %486 = vmatpush1.msra.mxu0 0.0
        %487 = vmatprep.subr.mxu0 0.0
        %488 = vmatpush1.msra.mxu0 0.0
        %489 = vmatprep.subr.mxu0 0.0
        %490 = vmatpush1.msra.mxu0 0.0
        %491 = vmatprep.subr.mxu0 0.0
        %492 = vmatpush1.msra.mxu0 0.0
        %493 = vmatprep.subr.mxu0 0.0
        %494 = vmatpush1.msra.mxu0 0.0
        %495 = vmatprep.subr.mxu0 0.0
        %496 = vmatpush1.msra.mxu0 0.0
        %497 = vmatprep.subr.mxu0 0.0
        %498 = vmatpush1.msra.mxu0 0.0
        %499 = vmatprep.subr.mxu0 0.0
        %500 = vmatpush1.msra.mxu0 0.0
        %501 = vmatprep.subr.mxu0 0.0
        %502 = vmatpush1.msra.mxu0 0.0
        %503 = vmatprep.subr.mxu0 0.0
        %504 = vmatpush1.msra.mxu0 0.0
        %505 = vmatprep.subr.mxu0 0.0
        %506 = vmatpush1.msra.mxu0 0.0
        %507 = vmatprep.subr.mxu0 0.0
        %508 = vmatpush1.msra.mxu0 0.0
        %509 = vmatprep.subr.mxu0 0.0
        %510 = vmatpush1.msra.mxu0 0.0
        %511 = vmatprep.subr.mxu0 0.0
        %512 = vmatpush1.msra.mxu0 0.0
        %513 = vmatprep.subr.mxu0 0.0
        %514 = vmatpush1.msra.mxu0 0.0
        %515 = vmatprep.subr.mxu0 0.0
        %516 = vmatpush1.msra.mxu0 0.0
        %517 = vmatprep.subr.mxu0 0.0
        %518 = vmatpush1.msra.mxu0 0.0
        %519 = vmatprep.subr.mxu0 0.0
        %520 = vmatpush1.msra.mxu0 0.0
        %521 = vmatprep.subr.mxu0 0.0
        %522 = vmatpush1.msra.mxu0 0.0
        %523 = vmatprep.subr.mxu0 0.0
        %524 = vmatpush1.msra.mxu0 0.0
        %525 = vmatprep.mubr.f32.mxu0 0.0
        %526 = vmatmul.mubr.f32.gmra.mrb[0].mxu0 %v450
        %v527 = vpop.f32.mrb[0].mxu0
        %v528 = vadd.f32 0.0, %v527
        %v529 = vpop.f32.mrb[0].mxu0
        %v530 = vadd.f32 0.0, %v529
        %531 = vdwg.mxu0
        %532 = vmatprep.subr.mxu0 %v459
        %533 = vmatpush1.msra.mxu0 %v457
        %534 = vmatprep.subr.mxu0 0.0
        %535 = vmatpush1.msra.mxu0 0.0
        %536 = vmatprep.subr.mxu0 0.0
        %537 = vmatpush1.msra.mxu0 0.0
        %538 = vmatprep.subr.mxu0 0.0
        %539 = vmatpush1.msra.mxu0 0.0
        %540 = vmatprep.subr.mxu0 0.0
        %541 = vmatpush1.msra.mxu0 0.0
        %542 = vmatprep.subr.mxu0 0.0
        %543 = vmatpush1.msra.mxu0 0.0
        %544 = vmatprep.subr.mxu0 0.0
        %545 = vmatpush1.msra.mxu0 0.0
        %546 = vmatprep.subr.mxu0 0.0
        %547 = vmatpush1.msra.mxu0 0.0
        %548 = vmatprep.subr.mxu0 0.0
        %549 = vmatpush1.msra.mxu0 0.0
        %550 = vmatprep.subr.mxu0 0.0
        %551 = vmatpush1.msra.mxu0 0.0
        %552 = vmatprep.subr.mxu0 0.0
        %553 = vmatpush1.msra.mxu0 0.0
        %554 = vmatprep.subr.mxu0 0.0
        %555 = vmatpush1.msra.mxu0 0.0
        %556 = vmatprep.subr.mxu0 0.0
        %557 = vmatpush1.msra.mxu0 0.0
        %558 = vmatprep.subr.mxu0 0.0
        %559 = vmatpush1.msra.mxu0 0.0
        %560 = vmatprep.subr.mxu0 0.0
        %561 = vmatpush1.msra.mxu0 0.0
        %562 = vmatprep.subr.mxu0 0.0
        %563 = vmatpush1.msra.mxu0 0.0
        %564 = vmatprep.subr.mxu0 0.0
        %565 = vmatpush1.msra.mxu0 0.0
        %566 = vmatprep.subr.mxu0 0.0
        %567 = vmatpush1.msra.mxu0 0.0
        %568 = vmatprep.subr.mxu0 0.0
        %569 = vmatpush1.msra.mxu0 0.0
        %570 = vmatprep.subr.mxu0 0.0
        %571 = vmatpush1.msra.mxu0 0.0
        %572 = vmatprep.subr.mxu0 0.0
        %573 = vmatpush1.msra.mxu0 0.0
        %574 = vmatprep.subr.mxu0 0.0
        %575 = vmatpush1.msra.mxu0 0.0
        %576 = vmatprep.subr.mxu0 0.0
        %577 = vmatpush1.msra.mxu0 0.0
        %578 = vmatprep.subr.mxu0 0.0
        %579 = vmatpush1.msra.mxu0 0.0
        %580 = vmatprep.subr.mxu0 0.0
        %581 = vmatpush1.msra.mxu0 0.0
        %582 = vmatprep.subr.mxu0 0.0
        %583 = vmatpush1.msra.mxu0 0.0
        %584 = vmatprep.subr.mxu0 0.0
        %585 = vmatpush1.msra.mxu0 0.0
        %586 = vmatprep.subr.mxu0 0.0
        %587 = vmatpush1.msra.mxu0 0.0
        %588 = vmatprep.subr.mxu0 0.0
        %589 = vmatpush1.msra.mxu0 0.0
        %590 = vmatprep.subr.mxu0 0.0
        %591 = vmatpush1.msra.mxu0 0.0
        %592 = vmatprep.subr.mxu0 0.0
        %593 = vmatpush1.msra.mxu0 0.0
        %594 = vmatprep.subr.mxu0 0.0
        %595 = vmatpush1.msra.mxu0 0.0
        %596 = vmatprep.mubr.f32.mxu0 0.0
        %597 = vmatmul.mubr.f32.gmra.mrb[0].mxu0 %v450
        %v598 = vpop.f32.mrb[0].mxu0
        %v599 = vadd.f32 0.0, %v598
        %v600 = vpop.f32.mrb[0].mxu0
        %v601 = vadd.f32 0.0, %v600
        %602 = vdwg.mxu0
        %v603 = vld [vmem:[%s199] sm:$0xff]
        %v604 = vld [vmem:[%s199 + $0x8] sm:$0xff]
        %v605 = vld [vmem:[%s199 + $0x10] sm:$0xff]
        %v606 = vld [vmem:[%s199 + $0x18] sm:$0xff]
        %v607 = vadd.f32 %v603, %v528
        %v608 = vadd.f32 %v604, %v530
        %v609 = vadd.f32 %v605, %v599
        %v610 = vadd.f32 %v606, %v601
        %611 = vst [vmem:[%s228] sm:$0xff] %v607
        %612 = vst [vmem:[%s228 + $0x8] sm:$0xff] %v608
        %613 = vst [vmem:[%s228 + $0x10] sm:$0xff] %v609
        %614 = vst [vmem:[%s228 + $0x18] sm:$0xff] %v610
        %s615 = sand.u32 %s123, 1
        %s616 = scalar_lea.sflag [#allocation4], %s615
        %s617 = sand.u32 %s123, 1
        %s618 = smul.addr %s617, 32
        %s619 = scalar_lea.vmem [#allocation5], %s618
        // Predicated region
        $region41: #{tpu_custom_call.1} parent=35 // pred_check
          %p620 = pneg %p133
        $region42: #{tpu_custom_call.1} parent=35 // pred_check_branch
          %622 = sbr.rel (%p620) target = $region44
        $region43: #{tpu_custom_call.1} parent=35 // pred_region
          %s624 = ssub.s32 512, 512
          %625 = vsyncadd %s616, %s624
          %s626 = smul.addr %s21, 4
          %s627 = smul.addr %s626, 128
          %s628 = scalar_lea.hbm %s4, %s627
          %s630 = sshll.u32 %s619, 4
          %s631 = int_to_ptr.vmem [resolvable:$true] %s630
          %633 = dma.vmem_to_hbm [thread:$0]  %s631, 512, %s628, %s616
        $region44: #{tpu_custom_call.1} parent=35 // pred_fallthru
          _
      $region36: #{tpu_custom_call.1} parent=5 // pred_fallthru
        _
      %p634 = scmp.le.s32.totalorder 2, %s16
      // Predicated region
      $region45: #{tpu_custom_call.1} parent=5 // pred_check
        %p635 = pneg %p634
      $region46: #{tpu_custom_call.1} parent=5 // pred_check_branch
        %637 = sbr.rel (%p635) target = $region48
      $region47: #{tpu_custom_call.1} parent=5 // pred_region
        %s638 = ssub.s32 %s16, 2
        // Predicated region
        $region49: #{tpu_custom_call.1} parent=47 // pred_check
          %p639 = pneg %p139
        $region50: #{tpu_custom_call.1} parent=47 // pred_check_branch
          %641 = sbr.rel (%p639) target = $region52
        $region51: #{tpu_custom_call.1} parent=47 // pred_region
          %s642 = sand.u32 %s124, 1
          %s643 = scalar_lea.sflag [#allocation4], %s642
          %s644 = sand.u32 %s124, 1
          %s645 = smul.addr %s644, 32
          %s646 = scalar_lea.vmem [#allocation5], %s645
          %647 = dma.done %s643, 512
        $region52: #{tpu_custom_call.1} parent=47 // pred_fallthru
          _
      $region48: #{tpu_custom_call.1} parent=5 // pred_fallthru
        _
    $region6: #{tpu_custom_call.1} parent=1 // loop_footer
      %s20 = sadd.s32 1, %s16
    $region7: #{tpu_custom_call.1} parent=1 // loop_footer_branch
      %15 = sbr.rel target = $region3
    $region8: #{tpu_custom_call.1} parent=1 // loop_exit
      _
    %648 = vsyncpa [#allocation3], 1
    %s649 = scalar_lea.sflag [#allocation3], 1
    %650 = vsyncpa %s649, 1
    %651 = vsyncpa [#allocation4], 1
    %s652 = scalar_lea.sflag [#allocation4], 1
    %653 = vsyncpa %s652, 1

</llo_original>
